<compile_context>
chip_gen: v7x
topology: tpu7x:2x2x1
jax: 0.10.0
libtpu: 0.0.40
codegen_flags: <defaults>
</compile_context>

<pallas_src>
import jax
import jax.numpy as jnp
from jax.experimental import pallas as pl
from jax.experimental.pallas import tpu as pltpu


def _round_up(x, m):
    return ((x + m - 1) // m) * m


def _pad2(a, rows, cols, value=0.0):
    r, c = a.shape
    if r == rows and c == cols:
        return a
    return jnp.pad(a, ((0, rows - r), (0, cols - c)), constant_values=value)


def _vmem_limit_bytes():
    """Scoped-VMEM limit: ~75% of physical VMEM (v5e/v6e 128 MiB, v7x 64 MiB)."""
    try:
        cap = pltpu.get_tpu_info().vmem_capacity_bytes
    except Exception:
        cap = 64 * 1024 * 1024  # conservative fallback (v7x per-TC size)
    return int(cap * 3 // 4)


# --------------------------------------------------------------------------- #
# Kernels
# --------------------------------------------------------------------------- #

def _epilogue(emb, w2_ref, b2_ref, inv_std_ref, shift_ref, w3_ref, b3_ref,
              clogit_ref, concept_ref, pred_ref, prob_ref):
    """cbl -> normalization -> final layer -> sigmoid, all on one batch tile."""
    # cbl: Linear -> concept logits (bf16 MXU inputs, f32 accumulation)
    concept_logits = (jnp.dot(emb.astype(w2_ref.dtype), w2_ref[...],
                              preferred_element_type=jnp.float32)
                      + b2_ref[...])

    # normalization: (logits - mean)/std == logits * (1/std) + (-mean/std)
    concepts = concept_logits * inv_std_ref[...] + shift_ref[...]

    # final layer: Linear -> class logits
    preds = (jnp.dot(concepts.astype(w3_ref.dtype), w3_ref[...],
                     preferred_element_type=jnp.float32)
             + b3_ref[...])

    # sigmoid probabilities (EUP transcendental slot)
    probs = jax.nn.sigmoid(preds)

    clogit_ref[...] = concept_logits
    concept_ref[...] = concepts
    pred_ref[...] = preds
    prob_ref[...] = probs


def _cbm_kernel_acc(x_ref, w1_ref, b1_ref, w2_ref, b2_ref, inv_std_ref,
                    shift_ref, w3_ref, b3_ref,
                    clogit_ref, concept_ref, pred_ref, prob_ref,
                    emb_acc):
    """grid = (batch_tiles, f_tiles); F is the inner reduction axis."""
    fk = pl.program_id(1)

    @pl.when(fk == 0)
    def _():
        emb_acc[...] = jnp.zeros_like(emb_acc)

    # backbone matmul: accumulate partial products over the in_features axis.
    emb_acc[...] += jnp.dot(x_ref[...], w1_ref[...],
                            preferred_element_type=jnp.float32)

    @pl.when(fk == pl.num_programs(1) - 1)
    def _():
        # backbone bias + ReLU (f32 elementwise -> safe on v5e)
        emb = jnp.maximum(emb_acc[...] + b1_ref[...], 0.0)
        _epilogue(emb, w2_ref, b2_ref, inv_std_ref, shift_ref, w3_ref, b3_ref,
                  clogit_ref, concept_ref, pred_ref, prob_ref)


def _cbm_kernel_single(x_ref, w1_ref, b1_ref, w2_ref, b2_ref, inv_std_ref,
                       shift_ref, w3_ref, b3_ref,
                       clogit_ref, concept_ref, pred_ref, prob_ref):
    """grid = (batch_tiles,); whole in_features axis fits one tile -> no scratch."""
    emb = jnp.maximum(
        jnp.dot(x_ref[...], w1_ref[...], preferred_element_type=jnp.float32)
        + b1_ref[...], 0.0)
    _epilogue(emb, w2_ref, b2_ref, inv_std_ref, shift_ref, w3_ref, b3_ref,
              clogit_ref, concept_ref, pred_ref, prob_ref)


# --------------------------------------------------------------------------- #
# Wrapper
# --------------------------------------------------------------------------- #

def prepare_params(params, *, f_tile=2048):
    """Pad + cast the weights ONCE (hoisted out of the per-forward hot path)."""
    w1, b1 = params["w1"], params["b1"]
    w2, b2 = params["w2"], params["b2"]
    mean, std = params["mean"], params["std"]
    w3, b3 = params["w3"], params["b3"]

    F, D = w1.shape
    K = w2.shape[1]
    N = w3.shape[1]

    # Pick the F reduction tile with minimal padding (lane-aligned to 128).
    Fp0 = _round_up(F, 128)
    f_tile = max(128, _round_up(f_tile, 128))
    nf = max(1, -(-Fp0 // f_tile))
    TF = _round_up(-(-Fp0 // nf), 128)
    Fp = TF * nf

    Dp = _round_up(D, 128)
    Kp = _round_up(K, 128)
    Np = _round_up(N, 128)

    # Constant folding of the normalization layer, done once.
    inv_std = 1.0 / std
    shift = -mean * inv_std

    f32, bf16 = jnp.float32, jnp.bfloat16
    prepared = {
        "w1": _pad2(w1.astype(bf16), Fp, Dp),
        "b1": _pad2(b1, 1, Dp).astype(f32),
        "w2": _pad2(w2.astype(bf16), Dp, Kp),
        "b2": _pad2(b2, 1, Kp).astype(f32),
        "inv_std": _pad2(inv_std, 1, Kp, value=1.0).astype(f32),  # never 0/inf
        "shift": _pad2(shift, 1, Kp, value=0.0).astype(f32),
        "w3": _pad2(w3.astype(bf16), Kp, Np),
        "b3": _pad2(b3, 1, Np).astype(f32),
    }
    dims = {"F": F, "D": D, "K": K, "N": N,
            "Fp": Fp, "TF": TF, "Dp": Dp, "Kp": Kp, "Np": Np}
    return prepared, dims


def vlgcbm_forward(x_nchw, prepared, dims, *, batch_tile=512):
    """x_nchw: [B, C, H, W] float32.  Returns dict like the PyTorch module."""
    B = x_nchw.shape[0]
    x_flat = x_nchw.reshape(B, -1)        # glue: flatten NCHW row-major (== torch flatten)
    assert x_flat.shape[1] == dims["F"], "input features do not match w1"

    Fp, TF = dims["Fp"], dims["TF"]
    Dp, Kp, Np = dims["Dp"], dims["Kp"], dims["Np"]
    K, N = dims["K"], dims["N"]

    # Batch tile: arithmetic-intensity knob for the w1 HBM stream.
    # Rounded to 16 (bf16 sublane packing) for small batches.
    TB = min(_round_up(batch_tile, 16), _round_up(B, 16))
    Bp = _round_up(B, TB)
    nb = Bp // TB
    # v7x megacore: keep at least two batch tiles so the "parallel" axis can
    # shard across both TensorCores when the batch is big enough to matter.
    if nb == 1 and TB >= 512:
        TB = _round_up(TB // 2, 16)
        Bp = _round_up(B, TB)
        nb = Bp // TB
    nf = Fp // TF

    # Cast-then-pad in a single pass (no redundant f32 round-trip).
    xp = _pad2(x_flat.astype(jnp.bfloat16), Bp, Fp)

    # Constant-index operands: single VMEM buffer (no double-buffer duplication).
    resident = pl.Buffered(1)

    f32 = jnp.float32
    out_shapes = (
        jax.ShapeDtypeStruct((Bp, Kp), f32),
        jax.ShapeDtypeStruct((Bp, Kp), f32),
        jax.ShapeDtypeStruct((Bp, Np), f32),
        jax.ShapeDtypeStruct((Bp, Np), f32),
    )
    # TODO(synk): emit concepts/probs in bf16 if downstream consumers allow, to
    # halve output writeback; kept f32 here to match the PyTorch reference.

    if nf == 1:
        kernel = _cbm_kernel_single
        grid = (nb,)
        in_specs = [
            pl.BlockSpec((TB, Fp), lambda bi: (bi, 0)),                            # x
            pl.BlockSpec((Fp, Dp), lambda bi: (0, 0), pipeline_mode=resident),     # w1
            pl.BlockSpec((1, Dp), lambda bi: (0, 0), pipeline_mode=resident),      # b1
            pl.BlockSpec((Dp, Kp), lambda bi: (0, 0), pipeline_mode=resident),     # w2
            pl.BlockSpec((1, Kp), lambda bi: (0, 0), pipeline_mode=resident),      # b2
            pl.BlockSpec((1, Kp), lambda bi: (0, 0), pipeline_mode=resident),      # 1/std
            pl.BlockSpec((1, Kp), lambda bi: (0, 0), pipeline_mode=resident),      # -mean/std
            pl.BlockSpec((Kp, Np), lambda bi: (0, 0), pipeline_mode=resident),     # w3
            pl.BlockSpec((1, Np), lambda bi: (0, 0), pipeline_mode=resident),      # b3
        ]
        out_specs = (
            pl.BlockSpec((TB, Kp), lambda bi: (bi, 0)),
            pl.BlockSpec((TB, Kp), lambda bi: (bi, 0)),
            pl.BlockSpec((TB, Np), lambda bi: (bi, 0)),
            pl.BlockSpec((TB, Np), lambda bi: (bi, 0)),
        )
        scratch_shapes = []
        dimension_semantics = ("parallel",)
    else:
        kernel = _cbm_kernel_acc
        grid = (nb, nf)
        in_specs = [
            pl.BlockSpec((TB, TF), lambda bi, fk: (bi, fk)),                           # x
            pl.BlockSpec((TF, Dp), lambda bi, fk: (fk, 0)),                            # w1 tile
            pl.BlockSpec((1, Dp), lambda bi, fk: (0, 0), pipeline_mode=resident),      # b1
            pl.BlockSpec((Dp, Kp), lambda bi, fk: (0, 0), pipeline_mode=resident),     # w2
            pl.BlockSpec((1, Kp), lambda bi, fk: (0, 0), pipeline_mode=resident),      # b2
            pl.BlockSpec((1, Kp), lambda bi, fk: (0, 0), pipeline_mode=resident),      # 1/std
            pl.BlockSpec((1, Kp), lambda bi, fk: (0, 0), pipeline_mode=resident),      # -mean/std
            pl.BlockSpec((Kp, Np), lambda bi, fk: (0, 0), pipeline_mode=resident),     # w3
            pl.BlockSpec((1, Np), lambda bi, fk: (0, 0), pipeline_mode=resident),      # b3
        ]
        out_specs = (
            pl.BlockSpec((TB, Kp), lambda bi, fk: (bi, 0)),
            pl.BlockSpec((TB, Kp), lambda bi, fk: (bi, 0)),
            pl.BlockSpec((TB, Np), lambda bi, fk: (bi, 0)),
            pl.BlockSpec((TB, Np), lambda bi, fk: (bi, 0)),
        )
        scratch_shapes = [pltpu.VMEM((TB, Dp), jnp.float32)]   # emb accumulator
        dimension_semantics = ("parallel", "arbitrary")

    grid_spec = pltpu.PrefetchScalarGridSpec(
        num_scalar_prefetch=0,
        grid=grid,
        in_specs=in_specs,
        out_specs=out_specs,
        scratch_shapes=scratch_shapes,
    )

    # Cost estimate matching the actual DMA pattern: w1 re-streamed per batch tile.
    w1_reads = nb if nf > 1 else 1
    flops = 2 * Bp * (Fp * Dp + Dp * Kp + Kp * Np)
    bytes_accessed = (
        xp.size * 2
        + w1_reads * prepared["w1"].size * 2
        + (prepared["w2"].size + prepared["w3"].size) * 2
        + (prepared["b1"].size + prepared["b2"].size + prepared["b3"].size
           + prepared["inv_std"].size + prepared["shift"].size) * 4
        + (2 * Bp * Kp + 2 * Bp * Np) * 4
    )
    cost = pl.CostEstimate(flops=flops, transcendentals=Bp * Np,
                           bytes_accessed=bytes_accessed)

    clogits, concepts, preds, probs = pl.pallas_call(
        kernel,
        out_shape=out_shapes,
        grid_spec=grid_spec,
        compiler_params=pltpu.CompilerParams(
            dimension_semantics=dimension_semantics,
            vmem_limit_bytes=_vmem_limit_bytes()),
        cost_estimate=cost,
    )(xp, prepared["w1"], prepared["b1"], prepared["w2"], prepared["b2"],
      prepared["inv_std"], prepared["shift"], prepared["w3"], prepared["b3"])

    return {
        "unnormalized_concepts": clogits[:B, :K],
        "concepts": concepts[:B, :K],
        "preds": preds[:B, :N],
        "probs": probs[:B, :N],
    }


def init_params(key, in_features, embed_dim, num_concepts, num_classes):
    k1, k2, k3, k4 = jax.random.split(key, 4)
    return {
        "w1": jax.random.normal(k1, (in_features, embed_dim), jnp.float32) * 0.02,
        "b1": jnp.zeros((1, embed_dim), jnp.float32),
        "w2": jax.random.normal(k2, (embed_dim, num_concepts), jnp.float32) * 0.1,
        "b2": jnp.zeros((1, num_concepts), jnp.float32),
        # normalization-layer buffers (std strictly positive)
        "mean": jax.random.normal(k3, (1, num_concepts), jnp.float32) * 0.1,
        "std": jnp.abs(jax.random.normal(k4, (1, num_concepts), jnp.float32)) * 0.1 + 1.0,
        "w3": jax.random.normal(jax.random.fold_in(key, 7),
                                (num_concepts, num_classes), jnp.float32) * 0.1,
        "b3": jnp.zeros((1, num_classes), jnp.float32),
    }


if __name__ == "__main__":
    key = jax.random.PRNGKey(0)
    kx, kp = jax.random.split(key)

    # small shapes consistent with the forward pass
    B, C, H, W = 2, 4, 16, 16
    embed_dim, num_concepts, num_classes = 32, 16, 8

    x = jax.random.normal(kx, (B, C, H, W), jnp.float32)  # NCHW
    params = init_params(kp, C * H * W, embed_dim, num_concepts, num_classes)

    # Weight pad/cast hoisted out of the per-forward hot path (done once).
    prepared, dims = prepare_params(params)
    jax.block_until_ready(prepared)

    out = vlgcbm_forward(x, prepared, dims)
    jax.block_until_ready(out)

    # sanity check vs a pure-JAX f32 reference (kernel uses bf16 MXU inputs,
    # f32 accumulation -> loose-but-tight-enough tolerance)
    xf = x.reshape(B, -1)
    emb_ref = jnp.maximum(xf @ params["w1"] + params["b1"], 0.0)
    cl_ref = emb_ref @ params["w2"] + params["b2"]
    cp_ref = (cl_ref - params["mean"]) / params["std"]
    pr_ref = cp_ref @ params["w3"] + params["b3"]
    pb_ref = jax.nn.sigmoid(pr_ref)
    assert jnp.allclose(out["unnormalized_concepts"], cl_ref, atol=2e-2)
    assert jnp.allclose(out["concepts"], cp_ref, atol=2e-2)
    assert jnp.allclose(out["preds"], pr_ref, atol=2e-2)
    assert jnp.allclose(out["probs"], pb_ref, atol=2e-2)

    print("KERNEL_OK")
</pallas_src>

<mosaic_0001>
module attributes {stable_mosaic.version = 11 : i64} {
  func.func @_cbm_kernel_single(%arg0: i32, %arg1: memref<16x1024xbf16, #tpu.memory_space<vmem>>, %arg2: memref<1024x128xbf16, #tpu.memory_space<vmem>>, %arg3: memref<1x128xf32, #tpu.memory_space<vmem>>, %arg4: memref<128x128xbf16, #tpu.memory_space<vmem>>, %arg5: memref<1x128xf32, #tpu.memory_space<vmem>>, %arg6: memref<1x128xf32, #tpu.memory_space<vmem>>, %arg7: memref<1x128xf32, #tpu.memory_space<vmem>>, %arg8: memref<128x128xbf16, #tpu.memory_space<vmem>>, %arg9: memref<1x128xf32, #tpu.memory_space<vmem>>, %arg10: memref<16x128xf32, #tpu.memory_space<vmem>>, %arg11: memref<16x128xf32, #tpu.memory_space<vmem>>, %arg12: memref<16x128xf32, #tpu.memory_space<vmem>>, %arg13: memref<16x128xf32, #tpu.memory_space<vmem>>) attributes {dimension_semantics = [#tpu.dimension_semantics<parallel>], iteration_bounds = array<i64: 1>, scalar_prefetch = 0 : i64, scratch_operands = 0 : i64, tpu.core_type = #tpu.core_type<tc>, window_params = [{transform_indices = @transform_0, window_bounds = array<i64: 16, 1024>}, {pipeline_mode = #tpu.pipeline_mode<synchronous>, transform_indices = @transform_1, window_bounds = array<i64: 1024, 128>}, {pipeline_mode = #tpu.pipeline_mode<synchronous>, transform_indices = @transform_2, window_bounds = array<i64: 1, 128>}, {pipeline_mode = #tpu.pipeline_mode<synchronous>, transform_indices = @transform_3, window_bounds = array<i64: 128, 128>}, {pipeline_mode = #tpu.pipeline_mode<synchronous>, transform_indices = @transform_4, window_bounds = array<i64: 1, 128>}, {pipeline_mode = #tpu.pipeline_mode<synchronous>, transform_indices = @transform_5, window_bounds = array<i64: 1, 128>}, {pipeline_mode = #tpu.pipeline_mode<synchronous>, transform_indices = @transform_6, window_bounds = array<i64: 1, 128>}, {pipeline_mode = #tpu.pipeline_mode<synchronous>, transform_indices = @transform_7, window_bounds = array<i64: 128, 128>}, {pipeline_mode = #tpu.pipeline_mode<synchronous>, transform_indices = @transform_8, window_bounds = array<i64: 1, 128>}, {transform_indices = @transform_9, window_bounds = array<i64: 16, 128>}, {transform_indices = @transform_10, window_bounds = array<i64: 16, 128>}, {transform_indices = @transform_11, window_bounds = array<i64: 16, 128>}, {transform_indices = @transform_12, window_bounds = array<i64: 16, 128>}]} {
    %c0 = arith.constant 0 : index
    %c0_0 = arith.constant 0 : index
    %0 = vector.load %arg1[%c0, %c0_0] : memref<16x1024xbf16, #tpu.memory_space<vmem>>, vector<16x1024xbf16>
    %c0_1 = arith.constant 0 : index
    %c0_2 = arith.constant 0 : index
    %1 = vector.load %arg2[%c0_1, %c0_2] : memref<1024x128xbf16, #tpu.memory_space<vmem>>, vector<1024x128xbf16>
    %cst = arith.constant dense<0.000000e+00> : vector<16x128xf32>
    %2 = tpu.matmul %0, %1, %cst {dimension_numbers = #tpu.dot_dimension_numbers<[1], [0], [0], [1], [0, 0, 1, 1], [], []>} : vector<16x1024xbf16>, vector<1024x128xbf16>, vector<16x128xf32> -> vector<16x128xf32>
    %c0_3 = arith.constant 0 : index
    %c0_4 = arith.constant 0 : index
    %3 = vector.load %arg3[%c0_3, %c0_4] : memref<1x128xf32, #tpu.memory_space<vmem>>, vector<1x128xf32>
    %4 = vector.broadcast %3 : vector<1x128xf32> to vector<16x128xf32>
    %5 = arith.addf %2, %4 : vector<16x128xf32>
    %cst_5 = arith.constant 0.000000e+00 : f32
    %6 = vector.broadcast %cst_5 : f32 to vector<16x128xf32>
    %7 = arith.maximumf %5, %6 : vector<16x128xf32>
    %8 = arith.truncf %7 : vector<16x128xf32> to vector<16x128xbf16>
    %c0_6 = arith.constant 0 : index
    %c0_7 = arith.constant 0 : index
    %9 = vector.load %arg4[%c0_6, %c0_7] : memref<128x128xbf16, #tpu.memory_space<vmem>>, vector<128x128xbf16>
    %cst_8 = arith.constant dense<0.000000e+00> : vector<16x128xf32>
    %10 = tpu.matmul %8, %9, %cst_8 {dimension_numbers = #tpu.dot_dimension_numbers<[1], [0], [0], [1], [0, 0, 1, 1], [], []>} : vector<16x128xbf16>, vector<128x128xbf16>, vector<16x128xf32> -> vector<16x128xf32>
    %c0_9 = arith.constant 0 : index
    %c0_10 = arith.constant 0 : index
    %11 = vector.load %arg5[%c0_9, %c0_10] : memref<1x128xf32, #tpu.memory_space<vmem>>, vector<1x128xf32>
    %12 = vector.broadcast %11 : vector<1x128xf32> to vector<16x128xf32>
    %13 = arith.addf %10, %12 : vector<16x128xf32>
    %c0_11 = arith.constant 0 : index
    %c0_12 = arith.constant 0 : index
    %14 = vector.load %arg6[%c0_11, %c0_12] : memref<1x128xf32, #tpu.memory_space<vmem>>, vector<1x128xf32>
    %15 = vector.broadcast %14 : vector<1x128xf32> to vector<16x128xf32>
    %16 = arith.mulf %13, %15 : vector<16x128xf32>
    %c0_13 = arith.constant 0 : index
    %c0_14 = arith.constant 0 : index
    %17 = vector.load %arg7[%c0_13, %c0_14] : memref<1x128xf32, #tpu.memory_space<vmem>>, vector<1x128xf32>
    %18 = vector.broadcast %17 : vector<1x128xf32> to vector<16x128xf32>
    %19 = arith.addf %16, %18 : vector<16x128xf32>
    %20 = arith.truncf %19 : vector<16x128xf32> to vector<16x128xbf16>
    %c0_15 = arith.constant 0 : index
    %c0_16 = arith.constant 0 : index
    %21 = vector.load %arg8[%c0_15, %c0_16] : memref<128x128xbf16, #tpu.memory_space<vmem>>, vector<128x128xbf16>
    %cst_17 = arith.constant dense<0.000000e+00> : vector<16x128xf32>
    %22 = tpu.matmul %20, %21, %cst_17 {dimension_numbers = #tpu.dot_dimension_numbers<[1], [0], [0], [1], [0, 0, 1, 1], [], []>} : vector<16x128xbf16>, vector<128x128xbf16>, vector<16x128xf32> -> vector<16x128xf32>
    %c0_18 = arith.constant 0 : index
    %c0_19 = arith.constant 0 : index
    %23 = vector.load %arg9[%c0_18, %c0_19] : memref<1x128xf32, #tpu.memory_space<vmem>>, vector<1x128xf32>
    %24 = vector.broadcast %23 : vector<1x128xf32> to vector<16x128xf32>
    %25 = arith.addf %22, %24 : vector<16x128xf32>
    %26 = arith.negf %25 : vector<16x128xf32>
    %27 = math.exp %26 : vector<16x128xf32>
    %cst_20 = arith.constant 1.000000e+00 : f32
    %28 = vector.broadcast %cst_20 : f32 to vector<16x128xf32>
    %29 = arith.addf %28, %27 : vector<16x128xf32>
    %30 = arith.divf %28, %29 : vector<16x128xf32>
    %c0_21 = arith.constant 0 : index
    %c0_22 = arith.constant 0 : index
    %31 = vector.load %arg10[%c0_21, %c0_22] : memref<16x128xf32, #tpu.memory_space<vmem>>, vector<16x128xf32>
    tpu.vector_store %arg10[%c0_21, %c0_22], %13 {strides = array<i32>} : memref<16x128xf32, #tpu.memory_space<vmem>>, vector<16x128xf32>,
    %c0_23 = arith.constant 0 : index
    %c0_24 = arith.constant 0 : index
    %32 = vector.load %arg11[%c0_23, %c0_24] : memref<16x128xf32, #tpu.memory_space<vmem>>, vector<16x128xf32>
    tpu.vector_store %arg11[%c0_23, %c0_24], %19 {strides = array<i32>} : memref<16x128xf32, #tpu.memory_space<vmem>>, vector<16x128xf32>,
    %c0_25 = arith.constant 0 : index
    %c0_26 = arith.constant 0 : index
    %33 = vector.load %arg12[%c0_25, %c0_26] : memref<16x128xf32, #tpu.memory_space<vmem>>, vector<16x128xf32>
    tpu.vector_store %arg12[%c0_25, %c0_26], %25 {strides = array<i32>} : memref<16x128xf32, #tpu.memory_space<vmem>>, vector<16x128xf32>,
    %c0_27 = arith.constant 0 : index
    %c0_28 = arith.constant 0 : index
    %34 = vector.load %arg13[%c0_27, %c0_28] : memref<16x128xf32, #tpu.memory_space<vmem>>, vector<16x128xf32>
    tpu.vector_store %arg13[%c0_27, %c0_28], %30 {strides = array<i32>} : memref<16x128xf32, #tpu.memory_space<vmem>>, vector<16x128xf32>,
    return
  }
  func.func @transform_0(%arg0: i32) -> (i32, i32) {
    %c0_i32 = arith.constant 0 : i32
    %c0_i32_0 = arith.constant 0 : i32
    return %arg0, %c0_i32 : i32, i32
  }
  func.func @transform_1(%arg0: i32) -> (i32, i32) {
    %c0_i32 = arith.constant 0 : i32
    %c0_i32_0 = arith.constant 0 : i32
    %c0_i32_1 = arith.constant 0 : i32
    return %c0_i32, %c0_i32_0 : i32, i32
  }
  func.func @transform_2(%arg0: i32) -> (i32, i32) {
    %c0_i32 = arith.constant 0 : i32
    %c0_i32_0 = arith.constant 0 : i32
    %c0_i32_1 = arith.constant 0 : i32
    return %c0_i32, %c0_i32_0 : i32, i32
  }
  func.func @transform_3(%arg0: i32) -> (i32, i32) {
    %c0_i32 = arith.constant 0 : i32
    %c0_i32_0 = arith.constant 0 : i32
    %c0_i32_1 = arith.constant 0 : i32
    return %c0_i32, %c0_i32_0 : i32, i32
  }
  func.func @transform_4(%arg0: i32) -> (i32, i32) {
    %c0_i32 = arith.constant 0 : i32
    %c0_i32_0 = arith.constant 0 : i32
    %c0_i32_1 = arith.constant 0 : i32
    return %c0_i32, %c0_i32_0 : i32, i32
  }
  func.func @transform_5(%arg0: i32) -> (i32, i32) {
    %c0_i32 = arith.constant 0 : i32
    %c0_i32_0 = arith.constant 0 : i32
    %c0_i32_1 = arith.constant 0 : i32
    return %c0_i32, %c0_i32_0 : i32, i32
  }
  func.func @transform_6(%arg0: i32) -> (i32, i32) {
    %c0_i32 = arith.constant 0 : i32
    %c0_i32_0 = arith.constant 0 : i32
    %c0_i32_1 = arith.constant 0 : i32
    return %c0_i32, %c0_i32_0 : i32, i32
  }
  func.func @transform_7(%arg0: i32) -> (i32, i32) {
    %c0_i32 = arith.constant 0 : i32
    %c0_i32_0 = arith.constant 0 : i32
    %c0_i32_1 = arith.constant 0 : i32
    return %c0_i32, %c0_i32_0 : i32, i32
  }
  func.func @transform_8(%arg0: i32) -> (i32, i32) {
    %c0_i32 = arith.constant 0 : i32
    %c0_i32_0 = arith.constant 0 : i32
    %c0_i32_1 = arith.constant 0 : i32
    return %c0_i32, %c0_i32_0 : i32, i32
  }
  func.func @transform_9(%arg0: i32) -> (i32, i32) {
    %c0_i32 = arith.constant 0 : i32
    %c0_i32_0 = arith.constant 0 : i32
    return %arg0, %c0_i32 : i32, i32
  }
  func.func @transform_10(%arg0: i32) -> (i32, i32) {
    %c0_i32 = arith.constant 0 : i32
    %c0_i32_0 = arith.constant 0 : i32
    return %arg0, %c0_i32 : i32, i32
  }
  func.func @transform_11(%arg0: i32) -> (i32, i32) {
    %c0_i32 = arith.constant 0 : i32
    %c0_i32_0 = arith.constant 0 : i32
    return %arg0, %c0_i32 : i32, i32
  }
  func.func @transform_12(%arg0: i32) -> (i32, i32) {
    %c0_i32 = arith.constant 0 : i32
    %c0_i32_0 = arith.constant 0 : i32
    return %arg0, %c0_i32 : i32, i32
  }
}

</mosaic_0001>

<llo_original>
// kernel: tpu_custom_call.1
$region0: #{tpu_custom_call.1}
  #allocation0 [shape = 'u32[]', space=smem, size = 0x4, offset = 0x4, fixed_abs, tag = 'smem constant byte address 0x4 - core index']
  #allocation1 [shape = 'u32[144,128]{1,0:T(1,128)}', space=vmem, size = 0x12000, scoped, tag = 'internal scratch']
  %s0 = inlined_call_operand.hbm [shape: bf16[16,1024], index: 0, kind: input, shape index: {}]
  %s1 = inlined_call_operand.hbm [shape: bf16[1024,128], index: 1, kind: input, shape index: {}]
  %s2 = inlined_call_operand.vmem [shape: f32[1,128], index: 2, kind: input, shape index: {}]
  %s3 = inlined_call_operand.hbm [shape: bf16[128,128], index: 3, kind: input, shape index: {}]
  %s4 = inlined_call_operand.vmem [shape: f32[1,128], index: 4, kind: input, shape index: {}]
  %s5 = inlined_call_operand.vmem [shape: f32[1,128], index: 5, kind: input, shape index: {}]
  %s6 = inlined_call_operand.vmem [shape: f32[1,128], index: 6, kind: input, shape index: {}]
  %s7 = inlined_call_operand.hbm [shape: bf16[128,128], index: 7, kind: input, shape index: {}]
  %s8 = inlined_call_operand.vmem [shape: f32[1,128], index: 8, kind: input, shape index: {}]
  %s9 = inlined_call_operand.hbm [shape: f32[16,128], index: 9, kind: output, shape index: {0}]
  %s10 = inlined_call_operand.hbm [shape: f32[16,128], index: 10, kind: output, shape index: {1}]
  %s11 = inlined_call_operand.hbm [shape: f32[16,128], index: 11, kind: output, shape index: {2}]
  %s12 = inlined_call_operand.hbm [shape: f32[16,128], index: 12, kind: output, shape index: {3}]
  %13 = xla_tuple %s9, %s10, %s11, %s12
  %s14 = sld [smem:[#allocation0]]
  $region86: #{tpu_custom_call.1} parent=0
    _
  %s16 = ssub.s32 1, %s14
  %s17 = scalar_select 0, %s16, %s14
  $region1: #{tpu_custom_call.1} parent=0
    #allocation2 [shape = 'u8[32768]{0}', space=vmem, size = 0x8000, scoped, tag = 'input window, operand 0, single buffered']
    #allocation3 [shape = 's32[1]{0}', space=sflag, size = 0x4, scoped, tag = 'scoped memory for tpu_custom_call.1']
    #allocation4 [shape = 's32[1]{0}', space=sflag, size = 0x4, scoped, tag = 'scoped memory for tpu_custom_call.1']
    #allocation5 [shape = 'u8[262144]{0}', space=vmem, size = 0x40000, scoped, tag = 'input window, operand 1, single buffered']
    #allocation6 [shape = 's32[1]{0}', space=sflag, size = 0x4, scoped, tag = 'scoped memory for tpu_custom_call.1']
    #allocation7 [shape = 'u8[32768]{0}', space=vmem, size = 0x8000, scoped, tag = 'input window, operand 3, single buffered']
    #allocation8 [shape = 'u8[32768]{0}', space=vmem, size = 0x8000, scoped, tag = 'input window, operand 7, single buffered']
    #allocation9 [shape = 's32[1]{0}', space=sflag, size = 0x4, scoped, tag = 'scoped memory for tpu_custom_call.1']
    #allocation10 [shape = 'u8[8192]{0}', space=vmem, size = 0x2000, scoped, tag = 'output window, operand 0, single buffered']
    #allocation11 [shape = 'u8[8192]{0}', space=vmem, size = 0x2000, scoped, tag = 'output window, operand 1, single buffered']
    #allocation12 [shape = 's32[1]{0}', space=sflag, size = 0x4, scoped, tag = 'scoped memory for tpu_custom_call.1']
    #allocation13 [shape = 'u8[8192]{0}', space=vmem, size = 0x2000, scoped, tag = 'output window, operand 2, single buffered']
    #allocation14 [shape = 'u8[8192]{0}', space=vmem, size = 0x2000, scoped, tag = 'output window, operand 3, single buffered']
    #allocation15 [shape = 's32[1]{0}', space=sflag, size = 0x4, scoped, tag = 'scoped memory for tpu_custom_call.1']
    %18 = vsyncpa [#allocation3], 0
    %19 = vsyncpa [#allocation6], 0
    %20 = vsyncpa [#allocation9], 0
    %21 = vsyncpa [#allocation4], 0
    %22 = vsyncpa [#allocation12], 0
    %23 = vsyncpa [#allocation15], 0
    // Predicated region
    $region2: #{tpu_custom_call.1} parent=1 // pred_check
      _
    $region3: #{tpu_custom_call.1} parent=1 // pred_check_branch
      %25 = sbr.rel (0) target = $region5
    $region4: #{tpu_custom_call.1} parent=1 // pred_region
      %s27 = ssub.s32 1024, 1024
      %28 = vsyncadd [#allocation3], %s27
      %s29 = sshll.u32 [#allocation2], 4
      %s30 = int_to_ptr.vmem [resolvable:$true] %s29
      %35 = dma.hbm_to_vmem [thread:$0]  %s0, 1024, %s30, [#allocation3], 512, 512, 32
    $region5: #{tpu_custom_call.1} parent=1 // pred_fallthru
      _
    // Predicated region
    $region6: #{tpu_custom_call.1} parent=1 // pred_check
      _
    $region7: #{tpu_custom_call.1} parent=1 // pred_check_branch
      %37 = sbr.rel (0) target = $region9
    $region8: #{tpu_custom_call.1} parent=1 // pred_region
      %s39 = ssub.s32 8192, 8192
      %40 = vsyncadd [#allocation6], %s39
      %s41 = sshll.u32 [#allocation5], 4
      %s42 = int_to_ptr.vmem [resolvable:$true] %s41
      %47 = dma.hbm_to_vmem [thread:$0]  %s1, 8192, %s42, [#allocation6], 64, 64, 4
    $region9: #{tpu_custom_call.1} parent=1 // pred_fallthru
      _
    // Predicated region
    $region10: #{tpu_custom_call.1} parent=1 // pred_check
      _
    $region11: #{tpu_custom_call.1} parent=1 // pred_check_branch
      %49 = sbr.rel (0) target = $region13
    $region12: #{tpu_custom_call.1} parent=1 // pred_region
      _
    $region13: #{tpu_custom_call.1} parent=1 // pred_fallthru
      _
    // Predicated region
    $region14: #{tpu_custom_call.1} parent=1 // pred_check
      _
    $region15: #{tpu_custom_call.1} parent=1 // pred_check_branch
      %51 = sbr.rel (0) target = $region17
    $region16: #{tpu_custom_call.1} parent=1 // pred_region
      %s53 = ssub.s32 1024, 1024
      %54 = vsyncadd [#allocation6], %s53
      %s55 = sshll.u32 [#allocation7], 4
      %s56 = int_to_ptr.vmem [resolvable:$true] %s55
      %61 = dma.hbm_to_vmem [thread:$0]  %s3, 1024, %s56, [#allocation6], 64, 64, 4
    $region17: #{tpu_custom_call.1} parent=1 // pred_fallthru
      _
    // Predicated region
    $region18: #{tpu_custom_call.1} parent=1 // pred_check
      _
    $region19: #{tpu_custom_call.1} parent=1 // pred_check_branch
      %63 = sbr.rel (0) target = $region21
    $region20: #{tpu_custom_call.1} parent=1 // pred_region
      _
    $region21: #{tpu_custom_call.1} parent=1 // pred_fallthru
      _
    // Predicated region
    $region22: #{tpu_custom_call.1} parent=1 // pred_check
      _
    $region23: #{tpu_custom_call.1} parent=1 // pred_check_branch
      %65 = sbr.rel (0) target = $region25
    $region24: #{tpu_custom_call.1} parent=1 // pred_region
      _
    $region25: #{tpu_custom_call.1} parent=1 // pred_fallthru
      _
    // Predicated region
    $region26: #{tpu_custom_call.1} parent=1 // pred_check
      _
    $region27: #{tpu_custom_call.1} parent=1 // pred_check_branch
      %67 = sbr.rel (0) target = $region29
    $region28: #{tpu_custom_call.1} parent=1 // pred_region
      _
    $region29: #{tpu_custom_call.1} parent=1 // pred_fallthru
      _
    // Predicated region
    $region30: #{tpu_custom_call.1} parent=1 // pred_check
      _
    $region31: #{tpu_custom_call.1} parent=1 // pred_check_branch
      %69 = sbr.rel (0) target = $region33
    $region32: #{tpu_custom_call.1} parent=1 // pred_region
      %s71 = ssub.s32 1024, 1024
      %72 = vsyncadd [#allocation9], %s71
      %s73 = sshll.u32 [#allocation8], 4
      %s74 = int_to_ptr.vmem [resolvable:$true] %s73
      %79 = dma.hbm_to_vmem [thread:$0]  %s7, 1024, %s74, [#allocation9], 64, 64, 4
    $region33: #{tpu_custom_call.1} parent=1 // pred_fallthru
      _
    // Predicated region
    $region34: #{tpu_custom_call.1} parent=1 // pred_check
      _
    $region35: #{tpu_custom_call.1} parent=1 // pred_check_branch
      %81 = sbr.rel (0) target = $region37
    $region36: #{tpu_custom_call.1} parent=1 // pred_region
      _
    $region37: #{tpu_custom_call.1} parent=1 // pred_fallthru
      _
    // Predicated region
    $region38: #{tpu_custom_call.1} parent=1 // pred_check
      _
    $region39: #{tpu_custom_call.1} parent=1 // pred_check_branch
      %83 = sbr.rel (0) target = $region41
    $region40: #{tpu_custom_call.1} parent=1 // pred_region
      %84 = dma.done [#allocation3], 1024
    $region41: #{tpu_custom_call.1} parent=1 // pred_fallthru
      _
    // Predicated region
    $region42: #{tpu_custom_call.1} parent=1 // pred_check
      _
    $region43: #{tpu_custom_call.1} parent=1 // pred_check_branch
      %86 = sbr.rel (0) target = $region45
    $region44: #{tpu_custom_call.1} parent=1 // pred_region
      %87 = dma.done [#allocation6], 8192
    $region45: #{tpu_custom_call.1} parent=1 // pred_fallthru
      _
    // Predicated region
    $region46: #{tpu_custom_call.1} parent=1 // pred_check
      _
    $region47: #{tpu_custom_call.1} parent=1 // pred_check_branch
      %89 = sbr.rel (0) target = $region49
    $region48: #{tpu_custom_call.1} parent=1 // pred_region
      %90 = dma.done [#allocation6], 1024
    $region49: #{tpu_custom_call.1} parent=1 // pred_fallthru
      _
    // Predicated region
    $region50: #{tpu_custom_call.1} parent=1 // pred_check
      _
    $region51: #{tpu_custom_call.1} parent=1 // pred_check_branch
      %92 = sbr.rel (0) target = $region53
    $region52: #{tpu_custom_call.1} parent=1 // pred_region
      %93 = dma.done [#allocation9], 1024
    $region53: #{tpu_custom_call.1} parent=1 // pred_fallthru
      _
    %v95 = vld [vmem:[#allocation2] sm:$0xff]
    %v96 = vld [vmem:[#allocation2 + $0x8] sm:$0xff]
    %v97 = vld [vmem:[#allocation2 + $0x10] sm:$0xff]
    %v98 = vld [vmem:[#allocation2 + $0x18] sm:$0xff]
    %v99 = vld [vmem:[#allocation2 + $0x20] sm:$0xff]
    %v100 = vld [vmem:[#allocation2 + $0x28] sm:$0xff]
    %v101 = vld [vmem:[#allocation2 + $0x30] sm:$0xff]
    %v102 = vld [vmem:[#allocation2 + $0x38] sm:$0xff]
    %v103 = vld [vmem:[#allocation5] sm:$0xf]
    %v104 = vld [vmem:[#allocation5 + $0x4] sm:$0xf]
    %v105 = vld [vmem:[#allocation5 + $0x8] sm:$0xf]
    %v106 = vld [vmem:[#allocation5 + $0xc] sm:$0xf]
    %v107 = vld [vmem:[#allocation5 + $0x10] sm:$0xf]
    %v108 = vld [vmem:[#allocation5 + $0x14] sm:$0xf]
    %v109 = vld [vmem:[#allocation5 + $0x18] sm:$0xf]
    %v110 = vld [vmem:[#allocation5 + $0x1c] sm:$0xf]
    %v111 = vld [vmem:[#allocation5 + $0x20] sm:$0xf]
    %v112 = vld [vmem:[#allocation5 + $0x24] sm:$0xf]
    %v113 = vld [vmem:[#allocation5 + $0x28] sm:$0xf]
    %v114 = vld [vmem:[#allocation5 + $0x2c] sm:$0xf]
    %v115 = vld [vmem:[#allocation5 + $0x30] sm:$0xf]
    %v116 = vld [vmem:[#allocation5 + $0x34] sm:$0xf]
    %v117 = vld [vmem:[#allocation5 + $0x38] sm:$0xf]
    %v118 = vld [vmem:[#allocation5 + $0x3c] sm:$0xf]
    %v119 = vld [vmem:[#allocation5 + $0x40] sm:$0xf]
    %v120 = vld [vmem:[#allocation5 + $0x44] sm:$0xf]
    %v121 = vld [vmem:[#allocation5 + $0x48] sm:$0xf]
    %v122 = vld [vmem:[#allocation5 + $0x4c] sm:$0xf]
    %v123 = vld [vmem:[#allocation5 + $0x50] sm:$0xf]
    %v124 = vld [vmem:[#allocation5 + $0x54] sm:$0xf]
    %v125 = vld [vmem:[#allocation5 + $0x58] sm:$0xf]
    %v126 = vld [vmem:[#allocation5 + $0x5c] sm:$0xf]
    %v127 = vld [vmem:[#allocation5 + $0x60] sm:$0xf]
    %v128 = vld [vmem:[#allocation5 + $0x64] sm:$0xf]
    %v129 = vld [vmem:[#allocation5 + $0x68] sm:$0xf]
    %v130 = vld [vmem:[#allocation5 + $0x6c] sm:$0xf]
    %v131 = vld [vmem:[#allocation5 + $0x70] sm:$0xf]
    %v132 = vld [vmem:[#allocation5 + $0x74] sm:$0xf]
    %v133 = vld [vmem:[#allocation5 + $0x78] sm:$0xf]
    %v134 = vld [vmem:[#allocation5 + $0x7c] sm:$0xf]
    %v135 = vld [vmem:[#allocation5 + $0x80] sm:$0xf]
    %v136 = vld [vmem:[#allocation5 + $0x84] sm:$0xf]
    %v137 = vld [vmem:[#allocation5 + $0x88] sm:$0xf]
    %v138 = vld [vmem:[#allocation5 + $0x8c] sm:$0xf]
    %v139 = vld [vmem:[#allocation5 + $0x90] sm:$0xf]
    %v140 = vld [vmem:[#allocation5 + $0x94] sm:$0xf]
    %v141 = vld [vmem:[#allocation5 + $0x98] sm:$0xf]
    %v142 = vld [vmem:[#allocation5 + $0x9c] sm:$0xf]
    %v143 = vld [vmem:[#allocation5 + $0xa0] sm:$0xf]
    %v144 = vld [vmem:[#allocation5 + $0xa4] sm:$0xf]
    %v145 = vld [vmem:[#allocation5 + $0xa8] sm:$0xf]
    %v146 = vld [vmem:[#allocation5 + $0xac] sm:$0xf]
    %v147 = vld [vmem:[#allocation5 + $0xb0] sm:$0xf]
    %v148 = vld [vmem:[#allocation5 + $0xb4] sm:$0xf]
    %v149 = vld [vmem:[#allocation5 + $0xb8] sm:$0xf]
    %v150 = vld [vmem:[#allocation5 + $0xbc] sm:$0xf]
    %v151 = vld [vmem:[#allocation5 + $0xc0] sm:$0xf]
    %v152 = vld [vmem:[#allocation5 + $0xc4] sm:$0xf]
    %v153 = vld [vmem:[#allocation5 + $0xc8] sm:$0xf]
    %v154 = vld [vmem:[#allocation5 + $0xcc] sm:$0xf]
    %v155 = vld [vmem:[#allocation5 + $0xd0] sm:$0xf]
    %v156 = vld [vmem:[#allocation5 + $0xd4] sm:$0xf]
    %v157 = vld [vmem:[#allocation5 + $0xd8] sm:$0xf]
    %v158 = vld [vmem:[#allocation5 + $0xdc] sm:$0xf]
    %v159 = vld [vmem:[#allocation5 + $0xe0] sm:$0xf]
    %v160 = vld [vmem:[#allocation5 + $0xe4] sm:$0xf]
    %v161 = vld [vmem:[#allocation5 + $0xe8] sm:$0xf]
    %v162 = vld [vmem:[#allocation5 + $0xec] sm:$0xf]
    %v163 = vld [vmem:[#allocation5 + $0xf0] sm:$0xf]
    %v164 = vld [vmem:[#allocation5 + $0xf4] sm:$0xf]
    %v165 = vld [vmem:[#allocation5 + $0xf8] sm:$0xf]
    %v166 = vld [vmem:[#allocation5 + $0xfc] sm:$0xf]
    %v167 = vld [vmem:[#allocation5 + $0x100] sm:$0xf]
    %v168 = vld [vmem:[#allocation5 + $0x104] sm:$0xf]
    %v169 = vld [vmem:[#allocation5 + $0x108] sm:$0xf]
    %v170 = vld [vmem:[#allocation5 + $0x10c] sm:$0xf]
    %v171 = vld [vmem:[#allocation5 + $0x110] sm:$0xf]
    %v172 = vld [vmem:[#allocation5 + $0x114] sm:$0xf]
    %v173 = vld [vmem:[#allocation5 + $0x118] sm:$0xf]
    %v174 = vld [vmem:[#allocation5 + $0x11c] sm:$0xf]
    %v175 = vld [vmem:[#allocation5 + $0x120] sm:$0xf]
    %v176 = vld [vmem:[#allocation5 + $0x124] sm:$0xf]
    %v177 = vld [vmem:[#allocation5 + $0x128] sm:$0xf]
    %v178 = vld [vmem:[#allocation5 + $0x12c] sm:$0xf]
    %v179 = vld [vmem:[#allocation5 + $0x130] sm:$0xf]
    %v180 = vld [vmem:[#allocation5 + $0x134] sm:$0xf]
    %v181 = vld [vmem:[#allocation5 + $0x138] sm:$0xf]
    %v182 = vld [vmem:[#allocation5 + $0x13c] sm:$0xf]
    %v183 = vld [vmem:[#allocation5 + $0x140] sm:$0xf]
    %v184 = vld [vmem:[#allocation5 + $0x144] sm:$0xf]
    %v185 = vld [vmem:[#allocation5 + $0x148] sm:$0xf]
    %v186 = vld [vmem:[#allocation5 + $0x14c] sm:$0xf]
    %v187 = vld [vmem:[#allocation5 + $0x150] sm:$0xf]
    %v188 = vld [vmem:[#allocation5 + $0x154] sm:$0xf]
    %v189 = vld [vmem:[#allocation5 + $0x158] sm:$0xf]
    %v190 = vld [vmem:[#allocation5 + $0x15c] sm:$0xf]
    %v191 = vld [vmem:[#allocation5 + $0x160] sm:$0xf]
    %v192 = vld [vmem:[#allocation5 + $0x164] sm:$0xf]
    %v193 = vld [vmem:[#allocation5 + $0x168] sm:$0xf]
    %v194 = vld [vmem:[#allocation5 + $0x16c] sm:$0xf]
    %v195 = vld [vmem:[#allocation5 + $0x170] sm:$0xf]
    %v196 = vld [vmem:[#allocation5 + $0x174] sm:$0xf]
    %v197 = vld [vmem:[#allocation5 + $0x178] sm:$0xf]
    %v198 = vld [vmem:[#allocation5 + $0x17c] sm:$0xf]
    %v199 = vld [vmem:[#allocation5 + $0x180] sm:$0xf]
    %v200 = vld [vmem:[#allocation5 + $0x184] sm:$0xf]
    %v201 = vld [vmem:[#allocation5 + $0x188] sm:$0xf]
    %v202 = vld [vmem:[#allocation5 + $0x18c] sm:$0xf]
    %v203 = vld [vmem:[#allocation5 + $0x190] sm:$0xf]
    %v204 = vld [vmem:[#allocation5 + $0x194] sm:$0xf]
    %v205 = vld [vmem:[#allocation5 + $0x198] sm:$0xf]
    %v206 = vld [vmem:[#allocation5 + $0x19c] sm:$0xf]
    %v207 = vld [vmem:[#allocation5 + $0x1a0] sm:$0xf]
    %v208 = vld [vmem:[#allocation5 + $0x1a4] sm:$0xf]
    %v209 = vld [vmem:[#allocation5 + $0x1a8] sm:$0xf]
    %v210 = vld [vmem:[#allocation5 + $0x1ac] sm:$0xf]
    %v211 = vld [vmem:[#allocation5 + $0x1b0] sm:$0xf]
    %v212 = vld [vmem:[#allocation5 + $0x1b4] sm:$0xf]
    %v213 = vld [vmem:[#allocation5 + $0x1b8] sm:$0xf]
    %v214 = vld [vmem:[#allocation5 + $0x1bc] sm:$0xf]
    %v215 = vld [vmem:[#allocation5 + $0x1c0] sm:$0xf]
    %v216 = vld [vmem:[#allocation5 + $0x1c4] sm:$0xf]
    %v217 = vld [vmem:[#allocation5 + $0x1c8] sm:$0xf]
    %v218 = vld [vmem:[#allocation5 + $0x1cc] sm:$0xf]
    %v219 = vld [vmem:[#allocation5 + $0x1d0] sm:$0xf]
    %v220 = vld [vmem:[#allocation5 + $0x1d4] sm:$0xf]
    %v221 = vld [vmem:[#allocation5 + $0x1d8] sm:$0xf]
    %v222 = vld [vmem:[#allocation5 + $0x1dc] sm:$0xf]
    %v223 = vld [vmem:[#allocation5 + $0x1e0] sm:$0xf]
    %v224 = vld [vmem:[#allocation5 + $0x1e4] sm:$0xf]
    %v225 = vld [vmem:[#allocation5 + $0x1e8] sm:$0xf]
    %v226 = vld [vmem:[#allocation5 + $0x1ec] sm:$0xf]
    %v227 = vld [vmem:[#allocation5 + $0x1f0] sm:$0xf]
    %v228 = vld [vmem:[#allocation5 + $0x1f4] sm:$0xf]
    %v229 = vld [vmem:[#allocation5 + $0x1f8] sm:$0xf]
    %v230 = vld [vmem:[#allocation5 + $0x1fc] sm:$0xf]
    %v231 = vld [vmem:[%s2] sm:$0x1]
    %v233 = vlaneseq
    %v234 = vshrl.u32 %v233, 7
    %v235 = vsub.s32 0, %v234
    %v236 = vrot.slane %v231, %v235
    %v246 = vunpack.c.l.b16 %v95
    %v247 = vunpack.c.h.b16 %v95
    %v248 = vunpack.c.l.b16 %v96
    %v249 = vunpack.c.h.b16 %v96
    %v250 = vunpack.c.l.b16 %v97
    %v251 = vunpack.c.h.b16 %v97
    %v252 = vunpack.c.l.b16 %v98
    %v253 = vunpack.c.h.b16 %v98
    %v254 = vunpack.c.l.b16 %v99
    %v255 = vunpack.c.h.b16 %v99
    %v256 = vunpack.c.l.b16 %v100
    %v257 = vunpack.c.h.b16 %v100
    %v258 = vunpack.c.l.b16 %v101
    %v259 = vunpack.c.h.b16 %v101
    %v260 = vunpack.c.l.b16 %v102
    %v261 = vunpack.c.h.b16 %v102
    %v262 = vpack.c.b16 %v254, %v246
    %v263 = vpack.c.b16 %v255, %v247
    %v264 = vpack.c.b16 %v256, %v248
    %v265 = vpack.c.b16 %v257, %v249
    %v266 = vpack.c.b16 %v258, %v250
    %v267 = vpack.c.b16 %v259, %v251
    %v268 = vpack.c.b16 %v260, %v252
    %v269 = vpack.c.b16 %v261, %v253
    %v406 = vunpack.c.l.b16 %v103
    %v407 = vunpack.c.l.b16 %v104
    %v408 = vunpack.c.l.b16 %v105
    %v409 = vunpack.c.l.b16 %v106
    %v410 = vunpack.c.l.b16 %v107
    %v411 = vunpack.c.l.b16 %v108
    %v412 = vunpack.c.l.b16 %v109
    %v413 = vunpack.c.l.b16 %v110
    %v414 = vunpack.c.l.b16 %v111
    %v415 = vunpack.c.l.b16 %v112
    %v416 = vunpack.c.l.b16 %v113
    %v417 = vunpack.c.l.b16 %v114
    %v418 = vunpack.c.l.b16 %v115
    %v419 = vunpack.c.l.b16 %v116
    %v420 = vunpack.c.l.b16 %v117
    %v421 = vunpack.c.l.b16 %v118
    %v422 = vunpack.c.l.b16 %v119
    %v423 = vunpack.c.l.b16 %v120
    %v424 = vunpack.c.l.b16 %v121
    %v425 = vunpack.c.l.b16 %v122
    %v426 = vunpack.c.l.b16 %v123
    %v427 = vunpack.c.l.b16 %v124
    %v428 = vunpack.c.l.b16 %v125
    %v429 = vunpack.c.l.b16 %v126
    %v430 = vunpack.c.l.b16 %v127
    %v431 = vunpack.c.l.b16 %v128
    %v432 = vunpack.c.l.b16 %v129
    %v433 = vunpack.c.l.b16 %v130
    %v434 = vunpack.c.l.b16 %v131
    %v435 = vunpack.c.l.b16 %v132
    %v436 = vunpack.c.l.b16 %v133
    %v437 = vunpack.c.l.b16 %v134
    %v438 = vunpack.c.l.b16 %v135
    %v439 = vunpack.c.l.b16 %v136
    %v440 = vunpack.c.l.b16 %v137
    %v441 = vunpack.c.l.b16 %v138
    %v442 = vunpack.c.l.b16 %v139
    %v443 = vunpack.c.l.b16 %v140
    %v444 = vunpack.c.l.b16 %v141
    %v445 = vunpack.c.l.b16 %v142
    %v446 = vunpack.c.l.b16 %v143
    %v447 = vunpack.c.l.b16 %v144
    %v448 = vunpack.c.l.b16 %v145
    %v449 = vunpack.c.l.b16 %v146
    %v450 = vunpack.c.l.b16 %v147
    %v451 = vunpack.c.l.b16 %v148
    %v452 = vunpack.c.l.b16 %v149
    %v453 = vunpack.c.l.b16 %v150
    %v454 = vunpack.c.l.b16 %v151
    %v455 = vunpack.c.l.b16 %v152
    %v456 = vunpack.c.l.b16 %v153
    %v457 = vunpack.c.l.b16 %v154
    %v458 = vunpack.c.l.b16 %v155
    %v459 = vunpack.c.l.b16 %v156
    %v460 = vunpack.c.l.b16 %v157
    %v461 = vunpack.c.l.b16 %v158
    %v462 = vunpack.c.l.b16 %v159
    %v463 = vunpack.c.l.b16 %v160
    %v464 = vunpack.c.l.b16 %v161
    %v465 = vunpack.c.l.b16 %v162
    %v466 = vunpack.c.l.b16 %v163
    %v467 = vunpack.c.l.b16 %v164
    %v468 = vunpack.c.l.b16 %v165
    %v469 = vunpack.c.l.b16 %v166
    %v470 = vunpack.c.l.b16 %v167
    %v471 = vunpack.c.l.b16 %v168
    %v472 = vunpack.c.l.b16 %v169
    %v473 = vunpack.c.l.b16 %v170
    %v474 = vunpack.c.l.b16 %v171
    %v475 = vunpack.c.l.b16 %v172
    %v476 = vunpack.c.l.b16 %v173
    %v477 = vunpack.c.l.b16 %v174
    %v478 = vunpack.c.l.b16 %v175
    %v479 = vunpack.c.l.b16 %v176
    %v480 = vunpack.c.l.b16 %v177
    %v481 = vunpack.c.l.b16 %v178
    %v482 = vunpack.c.l.b16 %v179
    %v483 = vunpack.c.l.b16 %v180
    %v484 = vunpack.c.l.b16 %v181
    %v485 = vunpack.c.l.b16 %v182
    %v486 = vunpack.c.l.b16 %v183
    %v487 = vunpack.c.l.b16 %v184
    %v488 = vunpack.c.l.b16 %v185
    %v489 = vunpack.c.l.b16 %v186
    %v490 = vunpack.c.l.b16 %v187
    %v491 = vunpack.c.l.b16 %v188
    %v492 = vunpack.c.l.b16 %v189
    %v493 = vunpack.c.l.b16 %v190
    %v494 = vunpack.c.l.b16 %v191
    %v495 = vunpack.c.l.b16 %v192
    %v496 = vunpack.c.l.b16 %v193
    %v497 = vunpack.c.l.b16 %v194
    %v498 = vunpack.c.l.b16 %v195
    %v499 = vunpack.c.l.b16 %v196
    %v500 = vunpack.c.l.b16 %v197
    %v501 = vunpack.c.l.b16 %v198
    %v502 = vunpack.c.l.b16 %v199
    %v503 = vunpack.c.l.b16 %v200
    %v504 = vunpack.c.l.b16 %v201
    %v505 = vunpack.c.l.b16 %v202
    %v506 = vunpack.c.l.b16 %v203
    %v507 = vunpack.c.l.b16 %v204
    %v508 = vunpack.c.l.b16 %v205
    %v509 = vunpack.c.l.b16 %v206
    %v510 = vunpack.c.l.b16 %v207
    %v511 = vunpack.c.l.b16 %v208
    %v512 = vunpack.c.l.b16 %v209
    %v513 = vunpack.c.l.b16 %v210
    %v514 = vunpack.c.l.b16 %v211
    %v515 = vunpack.c.l.b16 %v212
    %v516 = vunpack.c.l.b16 %v213
    %v517 = vunpack.c.l.b16 %v214
    %v518 = vunpack.c.l.b16 %v215
    %v519 = vunpack.c.l.b16 %v216
    %v520 = vunpack.c.l.b16 %v217
    %v521 = vunpack.c.l.b16 %v218
    %v522 = vunpack.c.l.b16 %v219
    %v523 = vunpack.c.l.b16 %v220
    %v524 = vunpack.c.l.b16 %v221
    %v525 = vunpack.c.l.b16 %v222
    %v526 = vunpack.c.l.b16 %v223
    %v527 = vunpack.c.l.b16 %v224
    %v528 = vunpack.c.l.b16 %v225
    %v529 = vunpack.c.l.b16 %v226
    %v530 = vunpack.c.l.b16 %v227
    %v531 = vunpack.c.l.b16 %v228
    %v532 = vunpack.c.l.b16 %v229
    %v533 = vunpack.c.l.b16 %v230
    %v534 = vpack.c.b16 %v407, %v406
    %v535 = vpack.c.b16 %v409, %v408
    %v536 = vpack.c.b16 %v411, %v410
    %v537 = vpack.c.b16 %v413, %v412
    %v538 = vpack.c.b16 %v415, %v414
    %v539 = vpack.c.b16 %v417, %v416
    %v540 = vpack.c.b16 %v419, %v418
    %v541 = vpack.c.b16 %v421, %v420
    %v542 = vpack.c.b16 %v423, %v422
    %v543 = vpack.c.b16 %v425, %v424
    %v544 = vpack.c.b16 %v427, %v426
    %v545 = vpack.c.b16 %v429, %v428
    %v546 = vpack.c.b16 %v431, %v430
    %v547 = vpack.c.b16 %v433, %v432
    %v548 = vpack.c.b16 %v435, %v434
    %v549 = vpack.c.b16 %v437, %v436
    %v550 = vpack.c.b16 %v439, %v438
    %v551 = vpack.c.b16 %v441, %v440
    %v552 = vpack.c.b16 %v443, %v442
    %v553 = vpack.c.b16 %v445, %v444
    %v554 = vpack.c.b16 %v447, %v446
    %v555 = vpack.c.b16 %v449, %v448
    %v556 = vpack.c.b16 %v451, %v450
    %v557 = vpack.c.b16 %v453, %v452
    %v558 = vpack.c.b16 %v455, %v454
    %v559 = vpack.c.b16 %v457, %v456
    %v560 = vpack.c.b16 %v459, %v458
    %v561 = vpack.c.b16 %v461, %v460
    %v562 = vpack.c.b16 %v463, %v462
    %v563 = vpack.c.b16 %v465, %v464
    %v564 = vpack.c.b16 %v467, %v466
    %v565 = vpack.c.b16 %v469, %v468
    %v566 = vpack.c.b16 %v471, %v470
    %v567 = vpack.c.b16 %v473, %v472
    %v568 = vpack.c.b16 %v475, %v474
    %v569 = vpack.c.b16 %v477, %v476
    %v570 = vpack.c.b16 %v479, %v478
    %v571 = vpack.c.b16 %v481, %v480
    %v572 = vpack.c.b16 %v483, %v482
    %v573 = vpack.c.b16 %v485, %v484
    %v574 = vpack.c.b16 %v487, %v486
    %v575 = vpack.c.b16 %v489, %v488
    %v576 = vpack.c.b16 %v491, %v490
    %v577 = vpack.c.b16 %v493, %v492
    %v578 = vpack.c.b16 %v495, %v494
    %v579 = vpack.c.b16 %v497, %v496
    %v580 = vpack.c.b16 %v499, %v498
    %v581 = vpack.c.b16 %v501, %v500
    %v582 = vpack.c.b16 %v503, %v502
    %v583 = vpack.c.b16 %v505, %v504
    %v584 = vpack.c.b16 %v507, %v506
    %v585 = vpack.c.b16 %v509, %v508
    %v586 = vpack.c.b16 %v511, %v510
    %v587 = vpack.c.b16 %v513, %v512
    %v588 = vpack.c.b16 %v515, %v514
    %v589 = vpack.c.b16 %v517, %v516
    %v590 = vpack.c.b16 %v519, %v518
    %v591 = vpack.c.b16 %v521, %v520
    %v592 = vpack.c.b16 %v523, %v522
    %v593 = vpack.c.b16 %v525, %v524
    %v594 = vpack.c.b16 %v527, %v526
    %v595 = vpack.c.b16 %v529, %v528
    %v596 = vpack.c.b16 %v531, %v530
    %v597 = vpack.c.b16 %v533, %v532
    %662 = vmatprep.subr.bf16.mxu0 0
    %663 = vmatpush1.bf16.msra.mxu0 %v534
    %664 = vmatprep.subr.bf16.mxu0 0
    %665 = vmatpush1.bf16.msra.mxu0 %v535
    %666 = vmatprep.subr.bf16.mxu0 0
    %667 = vmatpush1.bf16.msra.mxu0 %v536
    %668 = vmatprep.subr.bf16.mxu0 0
    %669 = vmatpush1.bf16.msra.mxu0 %v537
    %670 = vmatprep.subr.bf16.mxu0 0
    %671 = vmatpush1.bf16.msra.mxu0 %v538
    %672 = vmatprep.subr.bf16.mxu0 0
    %673 = vmatpush1.bf16.msra.mxu0 %v539
    %674 = vmatprep.subr.bf16.mxu0 0
    %675 = vmatpush1.bf16.msra.mxu0 %v540
    %676 = vmatprep.subr.bf16.mxu0 0
    %677 = vmatpush1.bf16.msra.mxu0 %v541
    %678 = vmatprep.subr.bf16.mxu0 0
    %679 = vmatpush1.bf16.msra.mxu0 %v542
    %680 = vmatprep.subr.bf16.mxu0 0
    %681 = vmatpush1.bf16.msra.mxu0 %v543
    %682 = vmatprep.subr.bf16.mxu0 0
    %683 = vmatpush1.bf16.msra.mxu0 %v544
    %684 = vmatprep.subr.bf16.mxu0 0
    %685 = vmatpush1.bf16.msra.mxu0 %v545
    %686 = vmatprep.subr.bf16.mxu0 0
    %687 = vmatpush1.bf16.msra.mxu0 %v546
    %688 = vmatprep.subr.bf16.mxu0 0
    %689 = vmatpush1.bf16.msra.mxu0 %v547
    %690 = vmatprep.subr.bf16.mxu0 0
    %691 = vmatpush1.bf16.msra.mxu0 %v548
    %692 = vmatprep.subr.bf16.mxu0 0
    %693 = vmatpush1.bf16.msra.mxu0 %v549
    %694 = vmatprep.mubr.bf16.mxu0 %v263
    %695 = vmatmul.mubr.bf16.gmra.mrb[0].mxu0 %v262
    %v696 = vpop.f32.mrb[0].mxu0
    %v697 = vadd.f32 %v236, %v696
    %v698 = vpop.f32.mrb[0].mxu0
    %v699 = vpop.f32.mrb[0].mxu0
    %v700 = vadd.f32 %v236, %v699
    %v701 = vpop.f32.mrb[0].mxu0
    %702 = vdwg.mxu0
    %703 = vmatprep.subr.bf16.mxu0 0
    %704 = vmatpush1.bf16.msra.mxu0 %v550
    %705 = vmatprep.subr.bf16.mxu0 0
    %706 = vmatpush1.bf16.msra.mxu0 %v551
    %707 = vmatprep.subr.bf16.mxu0 0
    %708 = vmatpush1.bf16.msra.mxu0 %v552
    %709 = vmatprep.subr.bf16.mxu0 0
    %710 = vmatpush1.bf16.msra.mxu0 %v553
    %711 = vmatprep.subr.bf16.mxu0 0
    %712 = vmatpush1.bf16.msra.mxu0 %v554
    %713 = vmatprep.subr.bf16.mxu0 0
    %714 = vmatpush1.bf16.msra.mxu0 %v555
    %715 = vmatprep.subr.bf16.mxu0 0
    %716 = vmatpush1.bf16.msra.mxu0 %v556
    %717 = vmatprep.subr.bf16.mxu0 0
    %718 = vmatpush1.bf16.msra.mxu0 %v557
    %719 = vmatprep.subr.bf16.mxu0 0
    %720 = vmatpush1.bf16.msra.mxu0 %v558
    %721 = vmatprep.subr.bf16.mxu0 0
    %722 = vmatpush1.bf16.msra.mxu0 %v559
    %723 = vmatprep.subr.bf16.mxu0 0
    %724 = vmatpush1.bf16.msra.mxu0 %v560
    %725 = vmatprep.subr.bf16.mxu0 0
    %726 = vmatpush1.bf16.msra.mxu0 %v561
    %727 = vmatprep.subr.bf16.mxu0 0
    %728 = vmatpush1.bf16.msra.mxu0 %v562
    %729 = vmatprep.subr.bf16.mxu0 0
    %730 = vmatpush1.bf16.msra.mxu0 %v563
    %731 = vmatprep.subr.bf16.mxu0 0
    %732 = vmatpush1.bf16.msra.mxu0 %v564
    %733 = vmatprep.subr.bf16.mxu0 0
    %734 = vmatpush1.bf16.msra.mxu0 %v565
    %735 = vmatprep.mubr.bf16.mxu0 %v265
    %736 = vmatmul.mubr.bf16.gmra.mrb[0].mxu0 %v264
    %v737 = vpop.f32.mrb[0].mxu0
    %v738 = vadd.f32 %v697, %v737
    %v739 = vpop.f32.mrb[0].mxu0
    %v740 = vpop.f32.mrb[0].mxu0
    %v741 = vadd.f32 %v700, %v740
    %v742 = vpop.f32.mrb[0].mxu0
    %743 = vdwg.mxu0
    %744 = vmatprep.subr.bf16.mxu0 0
    %745 = vmatpush1.bf16.msra.mxu0 %v566
    %746 = vmatprep.subr.bf16.mxu0 0
    %747 = vmatpush1.bf16.msra.mxu0 %v567
    %748 = vmatprep.subr.bf16.mxu0 0
    %749 = vmatpush1.bf16.msra.mxu0 %v568
    %750 = vmatprep.subr.bf16.mxu0 0
    %751 = vmatpush1.bf16.msra.mxu0 %v569
    %752 = vmatprep.subr.bf16.mxu0 0
    %753 = vmatpush1.bf16.msra.mxu0 %v570
    %754 = vmatprep.subr.bf16.mxu0 0
    %755 = vmatpush1.bf16.msra.mxu0 %v571
    %756 = vmatprep.subr.bf16.mxu0 0
    %757 = vmatpush1.bf16.msra.mxu0 %v572
    %758 = vmatprep.subr.bf16.mxu0 0
    %759 = vmatpush1.bf16.msra.mxu0 %v573
    %760 = vmatprep.subr.bf16.mxu0 0
    %761 = vmatpush1.bf16.msra.mxu0 %v574
    %762 = vmatprep.subr.bf16.mxu0 0
    %763 = vmatpush1.bf16.msra.mxu0 %v575
    %764 = vmatprep.subr.bf16.mxu0 0
    %765 = vmatpush1.bf16.msra.mxu0 %v576
    %766 = vmatprep.subr.bf16.mxu0 0
    %767 = vmatpush1.bf16.msra.mxu0 %v577
    %768 = vmatprep.subr.bf16.mxu0 0
    %769 = vmatpush1.bf16.msra.mxu0 %v578
    %770 = vmatprep.subr.bf16.mxu0 0
    %771 = vmatpush1.bf16.msra.mxu0 %v579
    %772 = vmatprep.subr.bf16.mxu0 0
    %773 = vmatpush1.bf16.msra.mxu0 %v580
    %774 = vmatprep.subr.bf16.mxu0 0
    %775 = vmatpush1.bf16.msra.mxu0 %v581
    %776 = vmatprep.mubr.bf16.mxu0 %v267
    %777 = vmatmul.mubr.bf16.gmra.mrb[0].mxu0 %v266
    %v778 = vpop.f32.mrb[0].mxu0
    %v779 = vadd.f32 %v738, %v778
    %v780 = vpop.f32.mrb[0].mxu0
    %v781 = vpop.f32.mrb[0].mxu0
    %v782 = vadd.f32 %v741, %v781
    %v783 = vpop.f32.mrb[0].mxu0
    %784 = vdwg.mxu0
    %785 = vmatprep.subr.bf16.mxu0 0
    %786 = vmatpush1.bf16.msra.mxu0 %v582
    %787 = vmatprep.subr.bf16.mxu0 0
    %788 = vmatpush1.bf16.msra.mxu0 %v583
    %789 = vmatprep.subr.bf16.mxu0 0
    %790 = vmatpush1.bf16.msra.mxu0 %v584
    %791 = vmatprep.subr.bf16.mxu0 0
    %792 = vmatpush1.bf16.msra.mxu0 %v585
    %793 = vmatprep.subr.bf16.mxu0 0
    %794 = vmatpush1.bf16.msra.mxu0 %v586
    %795 = vmatprep.subr.bf16.mxu0 0
    %796 = vmatpush1.bf16.msra.mxu0 %v587
    %797 = vmatprep.subr.bf16.mxu0 0
    %798 = vmatpush1.bf16.msra.mxu0 %v588
    %799 = vmatprep.subr.bf16.mxu0 0
    %800 = vmatpush1.bf16.msra.mxu0 %v589
    %801 = vmatprep.subr.bf16.mxu0 0
    %802 = vmatpush1.bf16.msra.mxu0 %v590
    %803 = vmatprep.subr.bf16.mxu0 0
    %804 = vmatpush1.bf16.msra.mxu0 %v591
    %805 = vmatprep.subr.bf16.mxu0 0
    %806 = vmatpush1.bf16.msra.mxu0 %v592
    %807 = vmatprep.subr.bf16.mxu0 0
    %808 = vmatpush1.bf16.msra.mxu0 %v593
    %809 = vmatprep.subr.bf16.mxu0 0
    %810 = vmatpush1.bf16.msra.mxu0 %v594
    %811 = vmatprep.subr.bf16.mxu0 0
    %812 = vmatpush1.bf16.msra.mxu0 %v595
    %813 = vmatprep.subr.bf16.mxu0 0
    %814 = vmatpush1.bf16.msra.mxu0 %v596
    %815 = vmatprep.subr.bf16.mxu0 0
    %816 = vmatpush1.bf16.msra.mxu0 %v597
    %817 = vmatprep.mubr.bf16.mxu0 %v269
    %818 = vmatmul.mubr.bf16.gmra.mrb[0].mxu0 %v268
    %v819 = vpop.f32.mrb[0].mxu0
    %v820 = vadd.f32 %v779, %v819
    %v821 = vpop.f32.mrb[0].mxu0
    %v822 = vpop.f32.mrb[0].mxu0
    %v823 = vadd.f32 %v782, %v822
    %v824 = vpop.f32.mrb[0].mxu0
    %825 = vdwg.mxu0
    %v826 = vmax.f32 %v820, 0.0
    %v827 = vmax.f32 %v823, 0.0
    %v828 = vpack.c.bf16 %v827, %v826
    %v829 = vld [vmem:[#allocation7] sm:$0xf]
    %v830 = vld [vmem:[#allocation7 + $0x4] sm:$0xf]
    %v831 = vld [vmem:[#allocation7 + $0x8] sm:$0xf]
    %v832 = vld [vmem:[#allocation7 + $0xc] sm:$0xf]
    %v833 = vld [vmem:[#allocation7 + $0x10] sm:$0xf]
    %v834 = vld [vmem:[#allocation7 + $0x14] sm:$0xf]
    %v835 = vld [vmem:[#allocation7 + $0x18] sm:$0xf]
    %v836 = vld [vmem:[#allocation7 + $0x1c] sm:$0xf]
    %v837 = vld [vmem:[#allocation7 + $0x20] sm:$0xf]
    %v838 = vld [vmem:[#allocation7 + $0x24] sm:$0xf]
    %v839 = vld [vmem:[#allocation7 + $0x28] sm:$0xf]
    %v840 = vld [vmem:[#allocation7 + $0x2c] sm:$0xf]
    %v841 = vld [vmem:[#allocation7 + $0x30] sm:$0xf]
    %v842 = vld [vmem:[#allocation7 + $0x34] sm:$0xf]
    %v843 = vld [vmem:[#allocation7 + $0x38] sm:$0xf]
    %v844 = vld [vmem:[#allocation7 + $0x3c] sm:$0xf]
    %v845 = vld [vmem:[%s4] sm:$0x1]
    %v847 = vlaneseq
    %v848 = vshrl.u32 %v847, 7
    %v849 = vsub.s32 0, %v848
    %v850 = vrot.slane %v845, %v849
    %v868 = vunpack.c.l.b16 %v829
    %v869 = vunpack.c.l.b16 %v830
    %v870 = vunpack.c.l.b16 %v831
    %v871 = vunpack.c.l.b16 %v832
    %v872 = vunpack.c.l.b16 %v833
    %v873 = vunpack.c.l.b16 %v834
    %v874 = vunpack.c.l.b16 %v835
    %v875 = vunpack.c.l.b16 %v836
    %v876 = vunpack.c.l.b16 %v837
    %v877 = vunpack.c.l.b16 %v838
    %v878 = vunpack.c.l.b16 %v839
    %v879 = vunpack.c.l.b16 %v840
    %v880 = vunpack.c.l.b16 %v841
    %v881 = vunpack.c.l.b16 %v842
    %v882 = vunpack.c.l.b16 %v843
    %v883 = vunpack.c.l.b16 %v844
    %v884 = vpack.c.b16 %v869, %v868
    %v885 = vpack.c.b16 %v871, %v870
    %v886 = vpack.c.b16 %v873, %v872
    %v887 = vpack.c.b16 %v875, %v874
    %v888 = vpack.c.b16 %v877, %v876
    %v889 = vpack.c.b16 %v879, %v878
    %v890 = vpack.c.b16 %v881, %v880
    %v891 = vpack.c.b16 %v883, %v882
    %900 = vmatprep.subr.bf16.mxu0 0
    %901 = vmatpush1.bf16.msra.mxu0 %v884
    %902 = vmatprep.subr.bf16.mxu0 0
    %903 = vmatpush1.bf16.msra.mxu0 %v885
    %904 = vmatprep.subr.bf16.mxu0 0
    %905 = vmatpush1.bf16.msra.mxu0 %v886
    %906 = vmatprep.subr.bf16.mxu0 0
    %907 = vmatpush1.bf16.msra.mxu0 %v887
    %908 = vmatprep.subr.bf16.mxu0 0
    %909 = vmatpush1.bf16.msra.mxu0 %v888
    %910 = vmatprep.subr.bf16.mxu0 0
    %911 = vmatpush1.bf16.msra.mxu0 %v889
    %912 = vmatprep.subr.bf16.mxu0 0
    %913 = vmatpush1.bf16.msra.mxu0 %v890
    %914 = vmatprep.subr.bf16.mxu0 0
    %915 = vmatpush1.bf16.msra.mxu0 %v891
    %916 = vmatprep.subr.bf16.mxu0 0
    %917 = vmatpush1.bf16.msra.mxu0 0
    %918 = vmatprep.subr.bf16.mxu0 0
    %919 = vmatpush1.bf16.msra.mxu0 0
    %920 = vmatprep.subr.bf16.mxu0 0
    %921 = vmatpush1.bf16.msra.mxu0 0
    %922 = vmatprep.subr.bf16.mxu0 0
    %923 = vmatpush1.bf16.msra.mxu0 0
    %924 = vmatprep.subr.bf16.mxu0 0
    %925 = vmatpush1.bf16.msra.mxu0 0
    %926 = vmatprep.subr.bf16.mxu0 0
    %927 = vmatpush1.bf16.msra.mxu0 0
    %928 = vmatprep.subr.bf16.mxu0 0
    %929 = vmatpush1.bf16.msra.mxu0 0
    %930 = vmatprep.subr.bf16.mxu0 0
    %931 = vmatpush1.bf16.msra.mxu0 0
    %932 = vmatprep.mubr.bf16.mxu0 0
    %933 = vmatmul.mubr.bf16.gmra.mrb[0].mxu0 %v828
    %v934 = vpop.f32.mrb[0].mxu0
    %v935 = vadd.f32 %v850, %v934
    %v936 = vpop.f32.mrb[0].mxu0
    %v937 = vpop.f32.mrb[0].mxu0
    %v938 = vadd.f32 %v850, %v937
    %v939 = vpop.f32.mrb[0].mxu0
    %940 = vdwg.mxu0
    %v941 = vld [vmem:[%s5] sm:$0x1]
    %v943 = vlaneseq
    %v944 = vshrl.u32 %v943, 7
    %v945 = vsub.s32 0, %v944
    %v946 = vrot.slane %v941, %v945
    %v948 = vmul.f32 %v935, %v946
    %v949 = vmul.f32 %v938, %v946
    %v950 = vld [vmem:[%s6] sm:$0x1]
    %v952 = vlaneseq
    %v953 = vshrl.u32 %v952, 7
    %v954 = vsub.s32 0, %v953
    %v955 = vrot.slane %v950, %v954
    %v957 = vadd.f32 %v948, %v955
    %v958 = vadd.f32 %v949, %v955
    %v959 = vpack.c.bf16 %v958, %v957
    %v960 = vld [vmem:[#allocation8] sm:$0xf]
    %v961 = vld [vmem:[#allocation8 + $0x4] sm:$0xf]
    %v962 = vld [vmem:[#allocation8 + $0x8] sm:$0xf]
    %v963 = vld [vmem:[#allocation8 + $0xc] sm:$0xf]
    %v964 = vld [vmem:[#allocation8 + $0x10] sm:$0xf]
    %v965 = vld [vmem:[#allocation8 + $0x14] sm:$0xf]
    %v966 = vld [vmem:[#allocation8 + $0x18] sm:$0xf]
    %v967 = vld [vmem:[#allocation8 + $0x1c] sm:$0xf]
    %v968 = vld [vmem:[#allocation8 + $0x20] sm:$0xf]
    %v969 = vld [vmem:[#allocation8 + $0x24] sm:$0xf]
    %v970 = vld [vmem:[#allocation8 + $0x28] sm:$0xf]
    %v971 = vld [vmem:[#allocation8 + $0x2c] sm:$0xf]
    %v972 = vld [vmem:[#allocation8 + $0x30] sm:$0xf]
    %v973 = vld [vmem:[#allocation8 + $0x34] sm:$0xf]
    %v974 = vld [vmem:[#allocation8 + $0x38] sm:$0xf]
    %v975 = vld [vmem:[#allocation8 + $0x3c] sm:$0xf]
    %v976 = vld [vmem:[%s8] sm:$0x1]
    %v978 = vlaneseq
    %v979 = vshrl.u32 %v978, 7
    %v980 = vsub.s32 0, %v979
    %v981 = vrot.slane %v976, %v980
    %v999 = vunpack.c.l.b16 %v960
    %v1000 = vunpack.c.l.b16 %v961
    %v1001 = vunpack.c.l.b16 %v962
    %v1002 = vunpack.c.l.b16 %v963
    %v1003 = vunpack.c.l.b16 %v964
    %v1004 = vunpack.c.l.b16 %v965
    %v1005 = vunpack.c.l.b16 %v966
    %v1006 = vunpack.c.l.b16 %v967
    %v1007 = vunpack.c.l.b16 %v968
    %v1008 = vunpack.c.l.b16 %v969
    %v1009 = vunpack.c.l.b16 %v970
    %v1010 = vunpack.c.l.b16 %v971
    %v1011 = vunpack.c.l.b16 %v972
    %v1012 = vunpack.c.l.b16 %v973
    %v1013 = vunpack.c.l.b16 %v974
    %v1014 = vunpack.c.l.b16 %v975
    %v1015 = vpack.c.b16 %v1000, %v999
    %v1016 = vpack.c.b16 %v1002, %v1001
    %v1017 = vpack.c.b16 %v1004, %v1003
    %v1018 = vpack.c.b16 %v1006, %v1005
    %v1019 = vpack.c.b16 %v1008, %v1007
    %v1020 = vpack.c.b16 %v1010, %v1009
    %v1021 = vpack.c.b16 %v1012, %v1011
    %v1022 = vpack.c.b16 %v1014, %v1013
    %1031 = vmatprep.subr.bf16.mxu0 0
    %1032 = vmatpush1.bf16.msra.mxu0 %v1015
    %1033 = vmatprep.subr.bf16.mxu0 0
    %1034 = vmatpush1.bf16.msra.mxu0 %v1016
    %1035 = vmatprep.subr.bf16.mxu0 0
    %1036 = vmatpush1.bf16.msra.mxu0 %v1017
    %1037 = vmatprep.subr.bf16.mxu0 0
    %1038 = vmatpush1.bf16.msra.mxu0 %v1018
    %1039 = vmatprep.subr.bf16.mxu0 0
    %1040 = vmatpush1.bf16.msra.mxu0 %v1019
    %1041 = vmatprep.subr.bf16.mxu0 0
    %1042 = vmatpush1.bf16.msra.mxu0 %v1020
    %1043 = vmatprep.subr.bf16.mxu0 0
    %1044 = vmatpush1.bf16.msra.mxu0 %v1021
    %1045 = vmatprep.subr.bf16.mxu0 0
    %1046 = vmatpush1.bf16.msra.mxu0 %v1022
    %1047 = vmatprep.subr.bf16.mxu0 0
    %1048 = vmatpush1.bf16.msra.mxu0 0
    %1049 = vmatprep.subr.bf16.mxu0 0
    %1050 = vmatpush1.bf16.msra.mxu0 0
    %1051 = vmatprep.subr.bf16.mxu0 0
    %1052 = vmatpush1.bf16.msra.mxu0 0
    %1053 = vmatprep.subr.bf16.mxu0 0
    %1054 = vmatpush1.bf16.msra.mxu0 0
    %1055 = vmatprep.subr.bf16.mxu0 0
    %1056 = vmatpush1.bf16.msra.mxu0 0
    %1057 = vmatprep.subr.bf16.mxu0 0
    %1058 = vmatpush1.bf16.msra.mxu0 0
    %1059 = vmatprep.subr.bf16.mxu0 0
    %1060 = vmatpush1.bf16.msra.mxu0 0
    %1061 = vmatprep.subr.bf16.mxu0 0
    %1062 = vmatpush1.bf16.msra.mxu0 0
    %1063 = vmatprep.mubr.bf16.mxu0 0
    %1064 = vmatmul.mubr.bf16.gmra.mrb[0].mxu0 %v959
    %v1065 = vpop.f32.mrb[0].mxu0
    %v1066 = vadd.f32 %v981, %v1065
    %v1067 = vpop.f32.mrb[0].mxu0
    %v1068 = vpop.f32.mrb[0].mxu0
    %v1069 = vadd.f32 %v981, %v1068
    %v1070 = vpop.f32.mrb[0].mxu0
    %1071 = vdwg.mxu0
    %v1072 = vxor.u32 %v1066, 2147483648
    %v1073 = vxor.u32 %v1069, 2147483648
    %v1074 = vmul.f32 %v1072, 1.442695
    %v1075 = vpow.pop %v1074
    %v1076 = vmul.f32 %v1073, 1.442695
    %v1077 = vpow.pop %v1076
    %v1078 = vadd.f32 %v1075, 1.0
    %v1079 = vadd.f32 %v1077, 1.0
    %v1080 = vrcp.pop %v1078
    %v1081 = vmul.f32 1.0, %v1080
    %v1082 = vrcp.pop %v1079
    %v1083 = vmul.f32 1.0, %v1082
    %1084 = vst [vmem:[#allocation10] sm:$0xff] %v935
    %1085 = vst [vmem:[#allocation10 + $0x8] sm:$0xff] %v938
    %1086 = vst [vmem:[#allocation11] sm:$0xff] %v957
    %1087 = vst [vmem:[#allocation11 + $0x8] sm:$0xff] %v958
    %1088 = vst [vmem:[#allocation13] sm:$0xff] %v1066
    %1089 = vst [vmem:[#allocation13 + $0x8] sm:$0xff] %v1069
    %1090 = vst [vmem:[#allocation14] sm:$0xff] %v1081
    %1091 = vst [vmem:[#allocation14 + $0x8] sm:$0xff] %v1083
    // Predicated region
    $region54: #{tpu_custom_call.1} parent=1 // pred_check
      _
    $region55: #{tpu_custom_call.1} parent=1 // pred_check_branch
      %1093 = sbr.rel (0) target = $region57
    $region56: #{tpu_custom_call.1} parent=1 // pred_region
      %s1095 = ssub.s32 256, 256
      %1096 = vsyncadd [#allocation4], %s1095
      %s1097 = sshll.u32 [#allocation10], 4
      %s1098 = int_to_ptr.vmem [resolvable:$true] %s1097
      %1103 = dma.vmem_to_hbm [thread:$0]  %s1098, 256, %s9, [#allocation4], 128, 128, 8
    $region57: #{tpu_custom_call.1} parent=1 // pred_fallthru
      _
    // Predicated region
    $region58: #{tpu_custom_call.1} parent=1 // pred_check
      _
    $region59: #{tpu_custom_call.1} parent=1 // pred_check_branch
      %1105 = sbr.rel (0) target = $region61
    $region60: #{tpu_custom_call.1} parent=1 // pred_region
      %s1107 = ssub.s32 256, 256
      %1108 = vsyncadd [#allocation12], %s1107
      %s1109 = sshll.u32 [#allocation11], 4
      %s1110 = int_to_ptr.vmem [resolvable:$true] %s1109
      %1115 = dma.vmem_to_hbm [thread:$0]  %s1110, 256, %s10, [#allocation12], 128, 128, 8
    $region61: #{tpu_custom_call.1} parent=1 // pred_fallthru
      _
    // Predicated region
    $region62: #{tpu_custom_call.1} parent=1 // pred_check
      _
    $region63: #{tpu_custom_call.1} parent=1 // pred_check_branch
      %1117 = sbr.rel (0) target = $region65
    $region64: #{tpu_custom_call.1} parent=1 // pred_region
      %s1119 = ssub.s32 256, 256
      %1120 = vsyncadd [#allocation12], %s1119
      %s1121 = sshll.u32 [#allocation13], 4
      %s1122 = int_to_ptr.vmem [resolvable:$true] %s1121
      %1127 = dma.vmem_to_hbm [thread:$0]  %s1122, 256, %s11, [#allocation12], 128, 128, 8
    $region65: #{tpu_custom_call.1} parent=1 // pred_fallthru
      _
    // Predicated region
    $region66: #{tpu_custom_call.1} parent=1 // pred_check
      _
    $region67: #{tpu_custom_call.1} parent=1 // pred_check_branch
      %1129 = sbr.rel (0) target = $region69
    $region68: #{tpu_custom_call.1} parent=1 // pred_region
      %s1131 = ssub.s32 256, 256
      %1132 = vsyncadd [#allocation15], %s1131
      %s1133 = sshll.u32 [#allocation14], 4
      %s1134 = int_to_ptr.vmem [resolvable:$true] %s1133
      %1139 = dma.vmem_to_hbm [thread:$0]  %s1134, 256, %s12, [#allocation15], 128, 128, 8
    $region69: #{tpu_custom_call.1} parent=1 // pred_fallthru
      _
    // Predicated region
    $region70: #{tpu_custom_call.1} parent=1 // pred_check
      _
    $region71: #{tpu_custom_call.1} parent=1 // pred_check_branch
      %1141 = sbr.rel (0) target = $region73
    $region72: #{tpu_custom_call.1} parent=1 // pred_region
      %1142 = dma.done [#allocation4], 256
    $region73: #{tpu_custom_call.1} parent=1 // pred_fallthru
      _
    // Predicated region
    $region74: #{tpu_custom_call.1} parent=1 // pred_check
      _
    $region75: #{tpu_custom_call.1} parent=1 // pred_check_branch
      %1144 = sbr.rel (0) target = $region77
    $region76: #{tpu_custom_call.1} parent=1 // pred_region
      %1145 = dma.done [#allocation12], 256
    $region77: #{tpu_custom_call.1} parent=1 // pred_fallthru
      _
    // Predicated region
    $region78: #{tpu_custom_call.1} parent=1 // pred_check
      _
    $region79: #{tpu_custom_call.1} parent=1 // pred_check_branch
      %1147 = sbr.rel (0) target = $region81
    $region80: #{tpu_custom_call.1} parent=1 // pred_region
      %1148 = dma.done [#allocation12], 256
    $region81: #{tpu_custom_call.1} parent=1 // pred_fallthru
      _
    // Predicated region
    $region82: #{tpu_custom_call.1} parent=1 // pred_check
      _
    $region83: #{tpu_custom_call.1} parent=1 // pred_check_branch
      %1150 = sbr.rel (0) target = $region85
    $region84: #{tpu_custom_call.1} parent=1 // pred_region
      %1151 = dma.done [#allocation15], 256
    $region85: #{tpu_custom_call.1} parent=1 // pred_fallthru
      _
    %1152 = vsyncpa [#allocation3], 1
    %1153 = vsyncpa [#allocation6], 1
    %1154 = vsyncpa [#allocation9], 1
    %1155 = vsyncpa [#allocation4], 1
    %1156 = vsyncpa [#allocation12], 1
    %1157 = vsyncpa [#allocation15], 1

</llo_original>
